<compile_context>
chip_gen: v5e
topology: v5e:2x2
jax: 0.10.0
libtpu: 0.0.40
codegen_flags: <defaults>
</compile_context>

<pallas_src>
import math

import jax
import jax.numpy as jnp
from jax.experimental import pallas as pl
from jax.experimental.pallas import tpu as pltpu


_INV_SQRT2 = 0.7071067811865476


def _erf(x):
    # Abramowitz & Stegun 7.1.26 rational approximation (|err| < 1.5e-7).
    # Only exp / divide / arithmetic -> guaranteed Mosaic lowering.  The
    # divide is exact (not pl.reciprocal(approx=True)) so the error bound
    # holds; one exact divide per element is cheap in a mem-bound kernel.
    a1, a2, a3, a4, a5 = 0.254829592, -0.284496736, 1.421413741, -1.453152027, 1.061405429
    p = 0.3275911
    ax = jnp.abs(x)
    t = 1.0 / (1.0 + p * ax)
    poly = ((((a5 * t + a4) * t + a3) * t + a2) * t + a1) * t
    r = 1.0 - poly * jnp.exp(-ax * ax)
    return jnp.where(x >= 0.0, r, -r)


def _gelu(x):
    # torch.nn.GELU() default: exact (erf-based) GELU, computed in f32.
    return 0.5 * x * (1.0 + _erf(x * _INV_SQRT2))


def crackconv_kernel(x_ref, w_ref, b_ref, o_ref):
    # x_ref: (C1, tile_hw)   spatial on lanes, channels on sublanes (batch squeezed)
    # w_ref: (C2, C1)        folded conv+BN weight
    # b_ref: (C2, 1)         folded BN bias, f32, broadcasts over lanes
    # o_ref: (C2, tile_hw)
    acc = jnp.dot(w_ref[...], x_ref[...], preferred_element_type=jnp.float32)
    acc = acc + b_ref[...]
    o_ref[...] = _gelu(acc).astype(o_ref.dtype)


def _pick_tile_hw(hw, target=1024):
    """Largest 128-multiple divisor of hw that is <= target; full hw otherwise."""
    if hw % 128 != 0:
        # Block equal to the full array dim is always legal (masked stores on
        # the tail only).  Pad H*W upstream to a 128-multiple for best perf.
        return hw
    best = 128
    t = 128
    while t <= min(hw, target):
        if hw % t == 0:
            best = t
        t += 128
    return best


def crackconv_forward(x, params, *, tile_hw=None):
    """x: (N, C1, H, W) NCHW.  Returns (N, C2, H, W) of x.dtype."""
    N, C1, H, W = x.shape
    w = params["w"]                      # (C2, C1), x.dtype or bf16
    b = params["b"]                      # (C2, 1), always f32
    C2 = w.shape[0]
    HW = H * W

    if tile_hw is None:
        tile_hw = _pick_tile_hw(HW)
    assert HW % tile_hw == 0, "tile_hw must divide H*W"

    x2 = x.reshape(N, C1, HW)            # free HBM reshape (wrapper side)
    grid = (N, HW // tile_hw)            # both axes parallel -> fills 2 TCs on v7x

    # --- VMEM budget: double-buffered in/out blocks + (double-buffered) params.
    xb = jnp.dtype(x2.dtype).itemsize
    wb = jnp.dtype(w.dtype).itemsize
    blk_bytes = 2 * (C1 * tile_hw * xb + C2 * tile_hw * xb)
    prm_bytes = 2 * (C2 * C1 * wb + C2 * 4)
    vmem_limit = min(max(4 << 20, 3 * (blk_bytes + prm_bytes)), 64 << 20)

    cost = pl.CostEstimate(
        flops=2 * N * C1 * C2 * HW,
        transcendentals=N * C2 * HW,                       # one exp per output elem
        bytes_accessed=(N * C1 * HW + N * C2 * HW) * xb + C2 * C1 * wb + C2 * 4,
    )

    out = pl.pallas_call(
        crackconv_kernel,
        out_shape=jax.ShapeDtypeStruct((N, C2, HW), x.dtype),
        grid=grid,
        in_specs=[
            pl.BlockSpec((pl.Squeezed(), C1, tile_hw), lambda n, h: (n, 0, h)),
            pl.BlockSpec((C2, C1), lambda n, h: (0, 0)),
            pl.BlockSpec((C2, 1), lambda n, h: (0, 0)),
        ],
        out_specs=pl.BlockSpec((pl.Squeezed(), C2, tile_hw), lambda n, h: (n, 0, h)),
        compiler_params=pltpu.CompilerParams(
            dimension_semantics=("parallel", "parallel"),
            vmem_limit_bytes=vmem_limit,
        ),
        cost_estimate=cost,
    )(x2, w, b)

    return out.reshape(N, C2, H, W)      # free HBM reshape back to NCHW


def init_params(key, c1, c2, k=1, d=6, dtype=jnp.float32):
    """Random CrackConv params (PyTorch-style init) with eval-mode BN folded in.

    The BN fold is done in f32; only the weight is cast to `dtype` (pass
    bf16 to halve matmul-input DMA width).  The bias always stays f32.
    """
    assert k == 1, "only the default k=1 (pointwise) configuration is implemented"
    eps = 1e-5
    kw, kg, kb, km, kv = jax.random.split(key, 5)

    # Conv2d(c1, c2, 1, bias=False): kaiming-uniform, bound = 1/sqrt(fan_in).
    fan_in = c1 * k * k
    bound = 1.0 / math.sqrt(fan_in)
    w = jax.random.uniform(kw, (c2, c1), minval=-bound, maxval=bound,
                           dtype=jnp.float32)

    # BatchNorm2d(c2) eval-mode running stats (randomized so folding is tested).
    gamma = 1.0 + 0.1 * jax.random.normal(kg, (c2,), dtype=jnp.float32)
    beta = 0.1 * jax.random.normal(kb, (c2,), dtype=jnp.float32)
    mean = 0.1 * jax.random.normal(km, (c2,), dtype=jnp.float32)
    var = jax.random.uniform(kv, (c2,), minval=0.5, maxval=1.5, dtype=jnp.float32)

    s = gamma / jnp.sqrt(var + eps)
    w_folded = w * s[:, None]            # (C2, C1), already (Cout, Cin) for W @ X
    b_folded = beta - mean * s           # (C2,), kept f32

    return {"w": w_folded.astype(dtype),
            "b": b_folded[:, None].astype(jnp.float32)}


def _reference(x, params):
    """Pure-JAX reference: 1x1 conv (folded BN) + exact GELU, all in f32."""
    N, C1, H, W = x.shape
    w = params["w"].astype(jnp.float32)
    b = params["b"].astype(jnp.float32)
    y = jnp.einsum("oc,nchw->nohw", w, x.astype(jnp.float32),
                   precision=jax.lax.Precision.HIGHEST)
    y = y + b[None, :, :, None]          # (C2,1) -> broadcast over H, W
    return jax.nn.gelu(y, approximate=False)


if __name__ == "__main__":
    key = jax.random.PRNGKey(0)
    kx, kp = jax.random.split(key)

    # CrackConv(c1=4, c2=8) at its defaults, NCHW input (2, 4, 16, 16).
    N, C1, C2, H, W = 2, 4, 8, 16, 16
    x = jax.random.normal(kx, (N, C1, H, W), dtype=jnp.float32)
    params = init_params(kp, C1, C2, dtype=jnp.float32)

    out = crackconv_forward(x, params)          # grid=(2, 1), both parallel
    jax.block_until_ready(out)
    assert out.shape == (N, C2, H, W) and out.dtype == jnp.float32

    ref = _reference(x, params)
    assert jnp.allclose(out, ref, atol=1e-4, rtol=1e-4), "mismatch vs reference"

    # bf16 I/O smoke run (weights + activations bf16, bias + accumulation f32).
    params_bf16 = init_params(kp, C1, C2, dtype=jnp.bfloat16)
    out_bf16 = crackconv_forward(x.astype(jnp.bfloat16), params_bf16)
    jax.block_until_ready(out_bf16)
    assert out_bf16.shape == (N, C2, H, W) and out_bf16.dtype == jnp.bfloat16

    print("KERNEL_OK")
</pallas_src>

<mosaic_0001>
module attributes {stable_mosaic.version = 11 : i64} {
  func.func @crackconv_kernel(%arg0: i32, %arg1: i32, %arg2: memref<1x4x256xf32, #tpu.memory_space<vmem>>, %arg3: memref<8x4xf32, #tpu.memory_space<vmem>>, %arg4: memref<8x1xf32, #tpu.memory_space<vmem>>, %arg5: memref<1x8x256xf32, #tpu.memory_space<vmem>>) attributes {dimension_semantics = [#tpu.dimension_semantics<parallel>, #tpu.dimension_semantics<parallel>], iteration_bounds = array<i64: 2, 1>, scalar_prefetch = 0 : i64, scratch_operands = 0 : i64, tpu.core_type = #tpu.core_type<tc>, window_params = [{transform_indices = @transform_0, window_bounds = array<i64: 1, 4, 256>}, {pipeline_mode = #tpu.pipeline_mode<synchronous>, transform_indices = @transform_1, window_bounds = array<i64: 8, 4>}, {pipeline_mode = #tpu.pipeline_mode<synchronous>, transform_indices = @transform_2, window_bounds = array<i64: 8, 1>}, {transform_indices = @transform_3, window_bounds = array<i64: 1, 8, 256>}]} {
    %c0 = arith.constant 0 : index
    %c0_0 = arith.constant 0 : index
    %0 = vector.load %arg3[%c0, %c0_0] : memref<8x4xf32, #tpu.memory_space<vmem>>, vector<8x4xf32>
    %c0_1 = arith.constant 0 : index
    %c0_2 = arith.constant 0 : index
    %c0_3 = arith.constant 0 : index
    %1 = vector.load %arg2[%c0_1, %c0_2, %c0_3] : memref<1x4x256xf32, #tpu.memory_space<vmem>>, vector<1x4x256xf32>
    %2 = vector.shape_cast %1 : vector<1x4x256xf32> to vector<4x256xf32>
    %cst = arith.constant dense<0.000000e+00> : vector<8x256xf32>
    %3 = tpu.matmul %0, %2, %cst {dimension_numbers = #tpu.dot_dimension_numbers<[1], [0], [0], [1], [0, 0, 1, 1], [], []>} : vector<8x4xf32>, vector<4x256xf32>, vector<8x256xf32> -> vector<8x256xf32>
    %c0_4 = arith.constant 0 : index
    %c0_5 = arith.constant 0 : index
    %4 = vector.load %arg4[%c0_4, %c0_5] : memref<8x1xf32, #tpu.memory_space<vmem>>, vector<8x1xf32>
    %5 = vector.broadcast %4 : vector<8x1xf32> to vector<8x256xf32>
    %6 = arith.addf %3, %5 : vector<8x256xf32>
    %cst_6 = arith.constant 5.000000e-01 : f32
    %7 = vector.broadcast %cst_6 : f32 to vector<8x256xf32>
    %8 = arith.mulf %7, %6 : vector<8x256xf32>
    %cst_7 = arith.constant 0.707106769 : f32
    %9 = vector.broadcast %cst_7 : f32 to vector<8x256xf32>
    %10 = arith.mulf %6, %9 : vector<8x256xf32>
    %11 = math.absf %10 : vector<8x256xf32>
    %cst_8 = arith.constant 0.327591091 : f32
    %12 = vector.broadcast %cst_8 : f32 to vector<8x256xf32>
    %13 = arith.mulf %12, %11 : vector<8x256xf32>
    %cst_9 = arith.constant 1.000000e+00 : f32
    %14 = vector.broadcast %cst_9 : f32 to vector<8x256xf32>
    %15 = arith.addf %14, %13 : vector<8x256xf32>
    %cst_10 = arith.constant 1.000000e+00 : f32
    %16 = vector.broadcast %cst_10 : f32 to vector<8x256xf32>
    %17 = arith.divf %16, %15 : vector<8x256xf32>
    %cst_11 = arith.constant 1.06140542 : f32
    %18 = vector.broadcast %cst_11 : f32 to vector<8x256xf32>
    %19 = arith.mulf %18, %17 : vector<8x256xf32>
    %cst_12 = arith.constant -1.45315206 : f32
    %20 = vector.broadcast %cst_12 : f32 to vector<8x256xf32>
    %21 = arith.addf %19, %20 : vector<8x256xf32>
    %22 = arith.mulf %21, %17 : vector<8x256xf32>
    %cst_13 = arith.constant 1.42141378 : f32
    %23 = vector.broadcast %cst_13 : f32 to vector<8x256xf32>
    %24 = arith.addf %22, %23 : vector<8x256xf32>
    %25 = arith.mulf %24, %17 : vector<8x256xf32>
    %cst_14 = arith.constant -0.284496725 : f32
    %26 = vector.broadcast %cst_14 : f32 to vector<8x256xf32>
    %27 = arith.addf %25, %26 : vector<8x256xf32>
    %28 = arith.mulf %27, %17 : vector<8x256xf32>
    %cst_15 = arith.constant 0.254829586 : f32
    %29 = vector.broadcast %cst_15 : f32 to vector<8x256xf32>
    %30 = arith.addf %28, %29 : vector<8x256xf32>
    %31 = arith.mulf %30, %17 : vector<8x256xf32>
    %cst_16 = arith.constant 0.000000e+00 : f32
    %32 = vector.broadcast %cst_16 : f32 to vector<8x256xf32>
    %33 = arith.subf %32, %11 : vector<8x256xf32>
    %34 = arith.mulf %33, %11 : vector<8x256xf32>
    %35 = math.exp %34 : vector<8x256xf32>
    %36 = arith.mulf %31, %35 : vector<8x256xf32>
    %cst_17 = arith.constant 1.000000e+00 : f32
    %37 = vector.broadcast %cst_17 : f32 to vector<8x256xf32>
    %38 = arith.subf %37, %36 : vector<8x256xf32>
    %cst_18 = arith.constant 0.000000e+00 : f32
    %39 = vector.broadcast %cst_18 : f32 to vector<8x256xf32>
    %40 = arith.cmpf oge, %10, %39 : vector<8x256xf32>
    %cst_19 = arith.constant 0.000000e+00 : f32
    %41 = vector.broadcast %cst_19 : f32 to vector<8x256xf32>
    %42 = arith.subf %41, %38 : vector<8x256xf32>
    %43 = arith.select %40, %38, %42 : vector<8x256xi1>, vector<8x256xf32>
    %cst_20 = arith.constant 1.000000e+00 : f32
    %44 = vector.broadcast %cst_20 : f32 to vector<8x256xf32>
    %45 = arith.addf %44, %43 : vector<8x256xf32>
    %46 = arith.mulf %8, %45 : vector<8x256xf32>
    %c0_21 = arith.constant 0 : index
    %c0_22 = arith.constant 0 : index
    %c0_23 = arith.constant 0 : index
    %47 = vector.load %arg5[%c0_21, %c0_22, %c0_23] : memref<1x8x256xf32, #tpu.memory_space<vmem>>, vector<1x8x256xf32>
    %48 = vector.shape_cast %47 : vector<1x8x256xf32> to vector<8x256xf32>
    %49 = vector.shape_cast %46 : vector<8x256xf32> to vector<1x8x256xf32>
    tpu.vector_store %arg5[%c0_21, %c0_22, %c0_23], %49 {strides = array<i32>} : memref<1x8x256xf32, #tpu.memory_space<vmem>>, vector<1x8x256xf32>,
    return
  }
  func.func @transform_0(%arg0: i32, %arg1: i32) -> (i32, i32, i32) {
    %c0_i32 = arith.constant 0 : i32
    %c0_i32_0 = arith.constant 0 : i32
    return %arg0, %c0_i32, %arg1 : i32, i32, i32
  }
  func.func @transform_1(%arg0: i32, %arg1: i32) -> (i32, i32) {
    %c0_i32 = arith.constant 0 : i32
    %c0_i32_0 = arith.constant 0 : i32
    %c0_i32_1 = arith.constant 0 : i32
    return %c0_i32, %c0_i32_0 : i32, i32
  }
  func.func @transform_2(%arg0: i32, %arg1: i32) -> (i32, i32) {
    %c0_i32 = arith.constant 0 : i32
    %c0_i32_0 = arith.constant 0 : i32
    %c0_i32_1 = arith.constant 0 : i32
    return %c0_i32, %c0_i32_0 : i32, i32
  }
  func.func @transform_3(%arg0: i32, %arg1: i32) -> (i32, i32, i32) {
    %c0_i32 = arith.constant 0 : i32
    %c0_i32_0 = arith.constant 0 : i32
    return %arg0, %c0_i32, %arg1 : i32, i32, i32
  }
}

</mosaic_0001>

<llo_original>
// kernel: tpu_custom_call.1
$region0: #{tpu_custom_call.1}
  #allocation0 [shape = 'u32[]', space=smem, size = 0x4, offset = 0x4, fixed_abs, tag = 'smem constant byte address 0x4 - core index']
  #allocation1 [shape = 'u32[72,128]{1,0:T(1,128)}', space=vmem, size = 0x9000, scoped, tag = 'internal scratch']
  %s0 = inlined_call_operand.vmem [shape: f32[2,4,256], index: 0, kind: input, shape index: {}]
  %s1 = inlined_call_operand.vmem [shape: f32[8,4], index: 1, kind: input, shape index: {}]
  %s2 = inlined_call_operand.vmem [shape: f32[8,1], index: 2, kind: input, shape index: {}]
  %s3 = inlined_call_operand.hbm [shape: f32[2,8,256], index: 3, kind: output, shape index: {}]
  %s4 = sld [smem:[#allocation0]]
  $region45: #{tpu_custom_call.1} parent=0
    _
  %s6 = ssub.s32 1, %s4
  %s7 = scalar_select 0, %s6, %s4
  $region1: #{tpu_custom_call.1} parent=0
    #allocation2 [shape = 'u8[16384]{0}', space=vmem, size = 0x4000, scoped, tag = 'output window, operand 0']
    #allocation3 [shape = 's32[2]{0}', space=sflag, size = 0x8, scoped, tag = 'scoped memory for tpu_custom_call.1']
    %8 = vsyncpa [#allocation3], 0
    %s9 = scalar_lea.sflag [#allocation3], 1
    %10 = vsyncpa %s9, 0
    loop: start=0, step=1, limit=4
    $region2: #{tpu_custom_call.1} parent=1 // loop_pre_header
      _
    $region3: #{tpu_custom_call.1} parent=1 // loop_header
      %s12 = sphi 0, %s16
      %p13 = scmp.ge.s32.totalorder %s12, 4
      %s19 = sphi 0, %s31
      %s20 = sphi 0, %s27
      %s21 = sphi 0, %s19
      %s22 = sphi 0, %s20
      %s23 = sphi 0, %s21
      %s24 = sphi 0, %s22
      %s36 = sphi 0, %s38
      %s39 = sphi 0, %s36
      %s40 = sphi 0, %s39
      %s56 = sphi 0, %s40
      %s60 = sphi 0, %s60
      %s62 = sphi 0, %s60
      %s63 = sphi 0, %s62
      %s77 = sphi 0, %s63
      %s81 = sphi 0, %s81
      %s83 = sphi 0, %s81
      %s84 = sphi 0, %s83
      %s98 = sphi 0, %s84
      %s106 = sphi 0, %s108
      %s109 = sphi 0, %s106
      %s110 = sphi 0, %s109
      %s126 = sphi 0, %s110
    $region4: #{tpu_custom_call.1} parent=1 // loop_header_branch
      %15 = sbr.rel (%p13) target = $region8
    $region5: #{tpu_custom_call.1} parent=1 // loop_body
      %s17 = ssub.s32 %s12, 1
      %s18 = ssub.s32 %s12, 2
      %s25 = sadd.s32 1, %s20
      %p26 = scmp.ge.s32.totalorder %s25, 1
      %s27 = scalar_select %p26, 0, %s25
      %s28 = sadd.s32 1, %s19
      %s29 = scalar_select %p26, %s28, %s19
      %p30 = scmp.ge.s32.totalorder %s29, 2
      %s31 = scalar_select %p30, 0, %s29
      %s32 = ssub.s32 %s19, %s31
      %s33 = ssub.s32 %s20, %s27
      %s34 = sor.u32 %s32, %s33
      %p35 = scmp.eq.s32.totalorder %s34, 0
      %s37 = sadd.s32 %s36, 1
      %s38 = scalar_select %p35, %s36, %s37
      %p41 = pneg %p35
      %p42 = scmp.eq.s32.totalorder %s12, 1
      %p43 = por %p41, %p42
      %p44 = scmp.ne.s32.totalorder %s36, %s39
      %p45 = scmp.eq.s32.totalorder %s12, 0
      %p46 = por %p44, %p45
      %p47 = scmp.ne.s32.totalorder %s36, %s39
      %p48 = scmp.eq.s32.totalorder %s17, 1
      %p49 = por %p47, %p48
      %p50 = scmp.ne.s32.totalorder %s39, %s40
      %p51 = scmp.eq.s32.totalorder %s17, 0
      %p52 = por %p50, %p51
      %p53 = scmp.ne.s32.totalorder %s39, %s40
      %p54 = scmp.eq.s32.totalorder %s18, 1
      %p55 = por %p53, %p54
      %p57 = scmp.ne.s32.totalorder %s40, %s56
      %p58 = scmp.eq.s32.totalorder %s18, 0
      %p59 = por %p57, %p58
      %s61 = sadd.s32 %s60, 1
      %p64 = scmp.eq.s32.totalorder %s12, 1
      %p65 = scmp.ne.s32.totalorder %s60, %s62
      %p66 = scmp.eq.s32.totalorder %s12, 0
      %p67 = por %p65, %p66
      %p68 = scmp.ne.s32.totalorder %s60, %s62
      %p69 = scmp.eq.s32.totalorder %s17, 1
      %p70 = por %p68, %p69
      %p71 = scmp.ne.s32.totalorder %s62, %s63
      %p72 = scmp.eq.s32.totalorder %s17, 0
      %p73 = por %p71, %p72
      %p74 = scmp.ne.s32.totalorder %s62, %s63
      %p75 = scmp.eq.s32.totalorder %s18, 1
      %p76 = por %p74, %p75
      %p78 = scmp.ne.s32.totalorder %s63, %s77
      %p79 = scmp.eq.s32.totalorder %s18, 0
      %p80 = por %p78, %p79
      %s82 = sadd.s32 %s81, 1
      %p85 = scmp.eq.s32.totalorder %s12, 1
      %p86 = scmp.ne.s32.totalorder %s81, %s83
      %p87 = scmp.eq.s32.totalorder %s12, 0
      %p88 = por %p86, %p87
      %p89 = scmp.ne.s32.totalorder %s81, %s83
      %p90 = scmp.eq.s32.totalorder %s17, 1
      %p91 = por %p89, %p90
      %p92 = scmp.ne.s32.totalorder %s83, %s84
      %p93 = scmp.eq.s32.totalorder %s17, 0
      %p94 = por %p92, %p93
      %p95 = scmp.ne.s32.totalorder %s83, %s84
      %p96 = scmp.eq.s32.totalorder %s18, 1
      %p97 = por %p95, %p96
      %p99 = scmp.ne.s32.totalorder %s84, %s98
      %p100 = scmp.eq.s32.totalorder %s18, 0
      %p101 = por %p99, %p100
      %s102 = ssub.s32 %s19, %s31
      %s103 = ssub.s32 %s20, %s27
      %s104 = sor.u32 %s102, %s103
      %p105 = scmp.eq.s32.totalorder %s104, 0
      %s107 = sadd.s32 %s106, 1
      %s108 = scalar_select %p105, %s106, %s107
      %p111 = pneg %p105
      %p112 = scmp.eq.s32.totalorder %s12, 1
      %p113 = por %p111, %p112
      %p114 = scmp.ne.s32.totalorder %s106, %s109
      %p115 = scmp.eq.s32.totalorder %s12, 0
      %p116 = por %p114, %p115
      %p117 = scmp.ne.s32.totalorder %s106, %s109
      %p118 = scmp.eq.s32.totalorder %s17, 1
      %p119 = por %p117, %p118
      %p120 = scmp.ne.s32.totalorder %s109, %s110
      %p121 = scmp.eq.s32.totalorder %s17, 0
      %p122 = por %p120, %p121
      %p123 = scmp.ne.s32.totalorder %s109, %s110
      %p124 = scmp.eq.s32.totalorder %s18, 1
      %p125 = por %p123, %p124
      %p127 = scmp.ne.s32.totalorder %s110, %s126
      %p128 = scmp.eq.s32.totalorder %s18, 0
      %p129 = por %p127, %p128
      %p130 = scmp.le.s32.totalorder 1, %s12
      %p131 = scmp.lt.s32.totalorder %s12, 3
      %p132 = pnand %p130, %p131
      %p133 = pneg %p132
      // Predicated region
      $region9: #{tpu_custom_call.1} parent=5 // pred_check
        _
      $region10: #{tpu_custom_call.1} parent=5 // pred_check_branch
        %135 = sbr.rel (%p132) target = $region12
      $region11: #{tpu_custom_call.1} parent=5 // pred_region
        %s136 = ssub.s32 %s12, 1
        // Predicated region
        $region13: #{tpu_custom_call.1} parent=11 // pred_check
          %p137 = pneg %p73
        $region14: #{tpu_custom_call.1} parent=11 // pred_check_branch
          %139 = sbr.rel (%p137) target = $region16
        $region15: #{tpu_custom_call.1} parent=11 // pred_region
          _
        $region16: #{tpu_custom_call.1} parent=11 // pred_fallthru
          _
        // Predicated region
        $region17: #{tpu_custom_call.1} parent=11 // pred_check
          %p140 = pneg %p94
        $region18: #{tpu_custom_call.1} parent=11 // pred_check_branch
          %142 = sbr.rel (%p140) target = $region20
        $region19: #{tpu_custom_call.1} parent=11 // pred_region
          _
        $region20: #{tpu_custom_call.1} parent=11 // pred_fallthru
          _
      $region12: #{tpu_custom_call.1} parent=5 // pred_fallthru
        _
      %p143 = scmp.lt.s32.totalorder %s12, 2
      // Predicated region
      $region21: #{tpu_custom_call.1} parent=5 // pred_check
        %p144 = pneg %p143
      $region22: #{tpu_custom_call.1} parent=5 // pred_check_branch
        %146 = sbr.rel (%p144) target = $region24
      $region23: #{tpu_custom_call.1} parent=5 // pred_region
        // Predicated region
        $region25: #{tpu_custom_call.1} parent=23 // pred_check
          %p147 = pneg %p46
        $region26: #{tpu_custom_call.1} parent=23 // pred_check_branch
          %149 = sbr.rel (%p147) target = $region28
        $region27: #{tpu_custom_call.1} parent=23 // pred_region
          %s150 = smul.u32 2, %s20
          %p151 = scmp.lt.s32.totalorder %s19, 1
          %s152 = scalar_select %p151, %s19, 1
          %p153 = scmp.lt.s32.totalorder %s150, 1
          %s154 = scalar_select %p153, %s150, 1
          %s155 = smul.addr %s152, 2
          %s156 = sadd.s32 %s154, %s155
          %s157 = smul.addr %s156, 4
          %s158 = scalar_lea.vmem %s0, %s157
          %s159 = smul.u32 2, %s20
        $region28: #{tpu_custom_call.1} parent=23 // pred_fallthru
          _
      $region24: #{tpu_custom_call.1} parent=5 // pred_fallthru
        _
      %p160 = scmp.le.s32.totalorder 1, %s12
      %p161 = scmp.lt.s32.totalorder %s12, 3
      %p162 = pnand %p160, %p161
      %p163 = pneg %p162
      // Predicated region
      $region29: #{tpu_custom_call.1} parent=5 // pred_check
        _
      $region30: #{tpu_custom_call.1} parent=5 // pred_check_branch
        %165 = sbr.rel (%p162) target = $region32
      $region31: #{tpu_custom_call.1} parent=5 // pred_region
        %s166 = ssub.s32 %s12, 1
        %s167 = smul.u32 2, %s22
        %p168 = scmp.lt.s32.totalorder %s21, 1
        %s169 = scalar_select %p168, %s21, 1
        %p170 = scmp.lt.s32.totalorder %s167, 1
        %s171 = scalar_select %p170, %s167, 1
        %s172 = smul.addr %s169, 2
        %s173 = sadd.s32 %s171, %s172
        %s174 = smul.addr %s173, 4
        %s175 = scalar_lea.vmem %s0, %s174
        %p176 = pneg %p52
        %p177 = pneg %p49
        %p178 = pneg %p73
        %p179 = pneg %p70
        %p180 = pneg %p94
        %p181 = pneg %p91
        %p182 = pneg %p122
        %p183 = pneg %p119
        %s184 = sand.u32 %s109, 1
        %s185 = scalar_lea.sflag [#allocation3], %s184
        %s186 = sand.u32 %s109, 1
        %s187 = smul.addr %s186, 16
        %s188 = scalar_lea.vmem [#allocation2], %s187
        %s189 = smul.u32 2, %s22
        %p190 = scmp.lt.s32.totalorder %s21, 1
        %s191 = scalar_select %p190, %s21, 1
        %p192 = scmp.lt.s32.totalorder %s189, 1
        %s193 = scalar_select %p192, %s189, 1
        %s194 = smul.addr %s191, 2
        %s195 = sadd.s32 %s193, %s194
        %s196 = smul.addr %s195, 4
        %s197 = scalar_lea.vmem %s0, %s196
        %s198 = smul.u32 2, %s22
        %s199 = smul.u32 2, %s22
        %v200 = vld [vmem:[%s1] sm:$0xff]
        %v201 = vld [vmem:[%s197] sm:$0xff]
        %v202 = vld [vmem:[%s2] sm:$0xff]
        %204 = vset.pattern.permute.xlu0 0
        %205 = vperm.xlu0 %204, %v202
        %v206 = vpop.permute.xlu0 %205
        %209 = vst [vmem:[#allocation1] ss:$2 sm:$0xff] %v201
        %v210 = vld.sshfl [vmem:[#allocation1] sm:$0xff pattern:$0x75316420]
        %v211 = vld.sshfl [vmem:[#allocation1 + $0x8] sm:$0xff pattern:$0x75316420]
        %vm212 = vcmask 31744
        %v214 = vsel %vm212, %v200, 0
        %vm216 = vcmask 1043456
        %v217 = vsel %vm216, %v210, 0
        %v219 = vsel %vm216, %v211, 0
        %221 = vmatpush.msra.mxu0 0.0
        %222 = vmatpush.msra.mxu0 0.0
        %223 = vmatpush.msra.mxu0 0.0
        %224 = vmatpush.msra.mxu0 0.0
        %225 = vmatpush.msra.mxu0 0.0
        %226 = vmatpush.msra.mxu0 0.0
        %227 = vmatpush.msra.mxu0 0.0
        %228 = vmatpush.msra.mxu0 0.0
        %229 = vmatpush.msra.mxu0 0.0
        %230 = vmatpush.msra.mxu0 0.0
        %231 = vmatpush.msra.mxu0 0.0
        %232 = vmatpush.msra.mxu0 0.0
        %233 = vmatpush.msra.mxu0 0.0
        %234 = vmatpush.msra.mxu0 0.0
        %235 = vmatpush.msra.mxu0 0.0
        %236 = vmatpush.msra.mxu0 %v217
        %237 = vmatmul.f32.gmra.mxu0 %v214
        %v238 = vpop.f32.mrf.mxu0
        %v239 = vadd.f32 %v206, %v238
        %240 = vdwg.mxu0
        %241 = vmatpush.msra.mxu0 0.0
        %242 = vmatpush.msra.mxu0 0.0
        %243 = vmatpush.msra.mxu0 0.0
        %244 = vmatpush.msra.mxu0 0.0
        %245 = vmatpush.msra.mxu0 0.0
        %246 = vmatpush.msra.mxu0 0.0
        %247 = vmatpush.msra.mxu0 0.0
        %248 = vmatpush.msra.mxu0 0.0
        %249 = vmatpush.msra.mxu0 0.0
        %250 = vmatpush.msra.mxu0 0.0
        %251 = vmatpush.msra.mxu0 0.0
        %252 = vmatpush.msra.mxu0 0.0
        %253 = vmatpush.msra.mxu0 0.0
        %254 = vmatpush.msra.mxu0 0.0
        %255 = vmatpush.msra.mxu0 0.0
        %256 = vmatpush.msra.mxu0 %v219
        %257 = vmatmul.f32.gmra.mxu0 %v214
        %v258 = vpop.f32.mrf.mxu0
        %v259 = vadd.f32 %v206, %v258
        %260 = vdwg.mxu0
        %v261 = vmul.f32 %v239, 0.5
        %v262 = vmul.f32 %v259, 0.5
        %v263 = vmul.f32 %v239, 0.70710677
        %v264 = vmul.f32 %v259, 0.70710677
        %v265 = vand.u32 2147483647, %v263
        %v266 = vand.u32 2147483647, %v264
        %v267 = vmul.f32 %v265, 0.3275911
        %v268 = vmul.f32 %v266, 0.3275911
        %v269 = vadd.f32 %v267, 1.0
        %v270 = vadd.f32 %v268, 1.0
        %v271 = vrcp.pop %v269
        %v272 = vmul.f32 %v269, %v271
        %v273 = vsub.f32 1.0, %v272
        %v274 = vmul.f32 %v271, %v273
        %v275 = vadd.f32 %v271, %v274
        %vm276 = vweird.f32 %v269
        %vm277 = vweird.f32 %v271
        %vm278 = vmor %vm276, %vm277
        %v279 = vsel %vm278, %v271, %v275
        %v280 = vand.u32 2147483647, %v269
        %vm281 = vcmp.eq.f32.partialorder %v280, 8.507059e+37
        %v282 = vand.u32 %v269, 2147483648
        %v283 = vor.u32 1.1754944e-38, %v282
        %v284 = vsel %vm281, %v283, %v279
        %v285 = vmul.f32 1.0, %v284
        %v286 = vrcp.pop %v270
        %v287 = vmul.f32 %v270, %v286
        %v288 = vsub.f32 1.0, %v287
        %v289 = vmul.f32 %v286, %v288
        %v290 = vadd.f32 %v286, %v289
        %vm291 = vweird.f32 %v270
        %vm292 = vweird.f32 %v286
        %vm293 = vmor %vm291, %vm292
        %v294 = vsel %vm293, %v286, %v290
        %v295 = vand.u32 2147483647, %v270
        %vm296 = vcmp.eq.f32.partialorder %v295, 8.507059e+37
        %v297 = vand.u32 %v270, 2147483648
        %v298 = vor.u32 1.1754944e-38, %v297
        %v299 = vsel %vm296, %v298, %v294
        %v300 = vmul.f32 1.0, %v299
        %v301 = vmul.f32 %v285, 1.0614054
        %v302 = vmul.f32 %v300, 1.0614054
        %v303 = vadd.f32 %v301, -1.4531521
        %v304 = vadd.f32 %v302, -1.4531521
        %v305 = vmul.f32 %v303, %v285
        %v306 = vmul.f32 %v304, %v300
        %v307 = vadd.f32 %v305, 1.4214138
        %v308 = vadd.f32 %v306, 1.4214138
        %v309 = vmul.f32 %v307, %v285
        %v310 = vmul.f32 %v308, %v300
        %v311 = vadd.f32 %v309, -0.28449672
        %v312 = vadd.f32 %v310, -0.28449672
        %v313 = vmul.f32 %v311, %v285
        %v314 = vmul.f32 %v312, %v300
        %v315 = vadd.f32 %v313, 0.2548296
        %v316 = vadd.f32 %v314, 0.2548296
        %v317 = vmul.f32 %v315, %v285
        %v318 = vmul.f32 %v316, %v300
        %v319 = vsub.f32 0.0, %v265
        %v320 = vsub.f32 0.0, %v266
        %v321 = vmul.f32 %v319, %v265
        %v322 = vmul.f32 %v320, %v266
        %v323 = vmul.f32 %v321, 1.442695
        %v324 = vpow.pop %v323
        %v325 = vmul.f32 %v322, 1.442695
        %v326 = vpow.pop %v325
        %v327 = vmul.f32 %v317, %v324
        %v328 = vmul.f32 %v318, %v326
        %v329 = vsub.f32 1.0, %v327
        %v330 = vsub.f32 1.0, %v328
        %vm331 = vcmp.ge.f32.partialorder %v263, 0.0
        %vm332 = vcmp.ge.f32.partialorder %v264, 0.0
        %v333 = vsub.f32 0.0, %v329
        %v334 = vsub.f32 0.0, %v330
        %v335 = vsel %vm331, %v329, %v333
        %v336 = vsel %vm332, %v330, %v334
        %v337 = vadd.f32 %v335, 1.0
        %v338 = vadd.f32 %v336, 1.0
        %v339 = vmul.f32 %v261, %v337
        %v340 = vmul.f32 %v262, %v338
        %341 = vst [vmem:[%s188] sm:$0xff] %v339
        %342 = vst [vmem:[%s188 + $0x8] sm:$0xff] %v340
        %s343 = sand.u32 %s109, 1
        %s344 = scalar_lea.sflag [#allocation3], %s343
        %s345 = sand.u32 %s109, 1
        %s346 = smul.addr %s345, 16
        %s347 = scalar_lea.vmem [#allocation2], %s346
        // Predicated region
        $region33: #{tpu_custom_call.1} parent=31 // pred_check
          %p348 = pneg %p119
        $region34: #{tpu_custom_call.1} parent=31 // pred_check_branch
          %350 = sbr.rel (%p348) target = $region36
        $region35: #{tpu_custom_call.1} parent=31 // pred_region
          %s351 = smul.u32 2, %s22
          %353 = vsyncadd %s344, 0
          %s354 = smul.addr %s21, 2
          %s355 = sadd.s32 %s351, %s354
          %s356 = smul.addr %s355, 8
          %s357 = scalar_lea.hbm %s3, %s356
          %s359 = sshll.u32 %s347, 4
          %s360 = int_to_ptr.vmem [resolvable:$true] %s359
          %s361 = sshll.u32 %s357, 4
          %s362 = int_to_ptr.hbm [resolvable:$true] %s361
          %364 = dma.vmem_to_hbm [thread:$0]  %s360, 256, %s362, %s344
        $region36: #{tpu_custom_call.1} parent=31 // pred_fallthru
          _
      $region32: #{tpu_custom_call.1} parent=5 // pred_fallthru
        _
      %p365 = scmp.le.s32.totalorder 2, %s12
      // Predicated region
      $region37: #{tpu_custom_call.1} parent=5 // pred_check
        %p366 = pneg %p365
      $region38: #{tpu_custom_call.1} parent=5 // pred_check_branch
        %368 = sbr.rel (%p366) target = $region40
      $region39: #{tpu_custom_call.1} parent=5 // pred_region
        %s369 = ssub.s32 %s12, 2
        // Predicated region
        $region41: #{tpu_custom_call.1} parent=39 // pred_check
          %p370 = pneg %p125
        $region42: #{tpu_custom_call.1} parent=39 // pred_check_branch
          %372 = sbr.rel (%p370) target = $region44
        $region43: #{tpu_custom_call.1} parent=39 // pred_region
          %s373 = sand.u32 %s110, 1
          %s374 = scalar_lea.sflag [#allocation3], %s373
          %s375 = sand.u32 %s110, 1
          %s376 = smul.addr %s375, 16
          %s377 = scalar_lea.vmem [#allocation2], %s376
          %379 = dma.done %s374, 256
        $region44: #{tpu_custom_call.1} parent=39 // pred_fallthru
          _
      $region40: #{tpu_custom_call.1} parent=5 // pred_fallthru
        _
    $region6: #{tpu_custom_call.1} parent=1 // loop_footer
      %s16 = sadd.s32 1, %s12
    $region7: #{tpu_custom_call.1} parent=1 // loop_footer_branch
      %11 = sbr.rel target = $region3
    $region8: #{tpu_custom_call.1} parent=1 // loop_exit
      _
    %380 = vsyncpa [#allocation3], 1
    %s381 = scalar_lea.sflag [#allocation3], 1
    %382 = vsyncpa %s381, 1

</llo_original>
